<compile_context>
chip_gen: v6e
topology: v6e:2x2x1
jax: 0.10.0
libtpu: 0.0.40
codegen_flags: <defaults>
</compile_context>

<pallas_src>
import jax
import jax.numpy as jnp
from jax.experimental import pallas as pl
from jax.experimental.pallas import tpu as pltpu

EPS = 1e-5
OUT_DTYPE = jnp.float32          # keep f32 to match the PyTorch module's output dtype
VMEM_LIMIT_BYTES = 32 * 1024 * 1024   # explicit scoped-VMEM limit (v5e default is 16 MiB)
_VMEM_TILE_BUDGET = 24 * 1024 * 1024  # planning budget: fits v7x's 64 MiB with headroom


def _upsample_linear_block_kernel(x_ref, w_ref, p_ref, o_ref, acc_ref):
    # x_ref:   (B, TK)   bf16 input K-slice (full batch)
    # w_ref:   (TK, TN)  bf16 weight tile
    # p_ref:   (2, TN)   f32, row 0 = gamma, row 1 = beta
    # o_ref:   (B, TN)   output tile
    # acc_ref: (B, TN)   f32 accumulator scratch (persists across the K axis)
    k = pl.program_id(1)
    nk = pl.num_programs(1)

    @pl.when(k == 0)
    def _init():
        acc_ref[...] = jnp.zeros_like(acc_ref)

    # bf16 x bf16 -> f32 accumulation on the MXU. Linear bias is mathematically cancelled
    # by the training-mode BatchNorm mean subtraction below, so it is never added.
    acc_ref[...] += jnp.dot(x_ref[...], w_ref[...], preferred_element_type=jnp.float32)

    @pl.when(k == nk - 1)
    def _finalize():
        y = acc_ref[...]
        # BatchNorm1d training-mode stats: per-feature batch mean / biased variance.
        # Feature tiles are fully independent, so per-tile stats are exact.
        mean = jnp.mean(y, axis=0, keepdims=True)
        var = jnp.maximum(jnp.mean(y * y, axis=0, keepdims=True) - mean * mean, 0.0)
        inv_std = jax.lax.rsqrt(var + EPS)

        params = p_ref[...]
        gamma = params[0:1, :]
        beta = params[1:2, :]
        # Folded BN: one (1,TN) scale + one (1,TN) shift -> 2 VPU ops per element.
        scale = gamma * inv_std
        shift = beta - mean * scale
        z = y * scale + shift

        # Swish: z*sigmoid(z) == 0.5*z*(1 + tanh(0.5*z)) — single EUP transcendental.
        o_ref[...] = (0.5 * z * (1.0 + jnp.tanh(0.5 * z))).astype(o_ref.dtype)


def _tile_vmem_bytes(B, tk, tn):
    # Conservative estimate: every pipelined operand charged for double buffering.
    x_bytes = 2 * B * tk * 2        # bf16 x K-slice
    w_bytes = 2 * tk * tn * 2       # bf16 weight tile (dominant term)
    p_bytes = 2 * 2 * tn * 4        # packed gamma/beta
    o_bytes = 2 * B * tn * 4        # f32 output tile
    a_bytes = B * tn * 4            # f32 accumulator scratch
    return x_bytes + w_bytes + p_bytes + o_bytes + a_bytes


def _pick_k_tile(in_feat):
    # Single K step unless IN is large enough to threaten VMEM residency.
    if in_feat <= 2048:
        return in_feat
    for tk in (2048, 1024, 512, 256, 128):
        if in_feat % tk == 0:
            return tk
    return in_feat  # irregular large IN: keep it resident (full-extent block)


def _pick_feature_tile(B, in_feat, out_feat, tk):
    candidates = [tn for tn in (1024, 512, 256, 128)
                  if out_feat % tn == 0 and _tile_vmem_bytes(B, tk, tn) <= _VMEM_TILE_BUDGET]
    # Prefer the largest tile that still leaves >= 2 feature-grid steps so both v7x
    # TensorCores get work under the "parallel" axis; fall back to the largest that fits.
    for tn in candidates:
        if out_feat // tn >= 2:
            return tn
    if candidates:
        return candidates[0]
    return out_feat  # small / irregular OUT: single full-extent (lane-dense if >=128) tile


def upsample_linear_block(x, weight, bias, gamma, beta, output_format):
    """x: (B, in_feat) or (B, h, w) with h*w == in_feat. Returns (B, out0, out1).

    `bias` is accepted for API parity with nn.Linear but is NOT used: training-mode
    BatchNorm's mean subtraction cancels a per-feature additive bias exactly.

    Note: at tiny sizes (e.g. B=4, IN=64, OUT=128) this call is launch/DMA-overhead
    bound; batch several blocks into one pallas_call or fuse with neighbors for real
    wall-clock wins.
    """
    del bias  # cancelled by training-mode BatchNorm (see module docstring)
    B = x.shape[0]
    in_feat, out_feat = weight.shape

    # bf16 operands into the MXU (halves the dominant weight DMA); f32 accumulation.
    x2d = x.reshape(B, in_feat).astype(jnp.bfloat16)
    w_bf16 = weight.astype(jnp.bfloat16)

    # Pack BN affine params into one (2, OUT) f32 array -> a single DMA per feature tile.
    params = jnp.stack(
        [gamma.reshape(out_feat).astype(jnp.float32),
         beta.reshape(out_feat).astype(jnp.float32)],
        axis=0,
    )

    tk = _pick_k_tile(in_feat)
    tn = _pick_feature_tile(B, in_feat, out_feat, tk)
    grid = (out_feat // tn, in_feat // tk)  # (feature tiles, K tiles); reduction axis last

    out = pl.pallas_call(
        _upsample_linear_block_kernel,
        out_shape=jax.ShapeDtypeStruct((B, out_feat), OUT_DTYPE),
        grid=grid,
        in_specs=[
            # x: constant feature-block index -> DMA'd only when its K block changes.
            pl.BlockSpec((B, tk), lambda j, k: (0, k)),
            pl.BlockSpec((tk, tn), lambda j, k: (k, j)),   # weight tile
            pl.BlockSpec((2, tn), lambda j, k: (0, j)),    # packed gamma/beta tile
        ],
        # Output block constant across K -> resident accumulator-style revisit.
        out_specs=pl.BlockSpec((B, tn), lambda j, k: (0, j)),
        scratch_shapes=[pltpu.VMEM((B, tn), jnp.float32)],
        compiler_params=pltpu.CompilerParams(
            # Feature tiles independent -> parallel (v7x megacore); K is a reduction.
            dimension_semantics=("parallel", "arbitrary"),
            vmem_limit_bytes=VMEM_LIMIT_BYTES,
        ),
    )(x2d, w_bf16, params)

    return out.reshape(B, output_format[0], output_format[1])


def _reference(x, weight, bias, gamma, beta, output_format, matmul_dtype=jnp.float32):
    # Plain-JAX reference of the full PyTorch forward (including the Linear bias, to
    # verify the bias-cancellation claim numerically). `matmul_dtype` lets the test also
    # build a precision-matched (bf16-operand) reference.
    B = x.shape[0]
    x2d = x.reshape(B, weight.shape[0]).astype(matmul_dtype)
    y = jnp.dot(x2d, weight.astype(matmul_dtype),
                preferred_element_type=jnp.float32,
                precision=jax.lax.Precision.HIGHEST) + bias
    mean = jnp.mean(y, axis=0, keepdims=True)
    var = jnp.mean((y - mean) ** 2, axis=0, keepdims=True)
    z = gamma * (y - mean) / jnp.sqrt(var + EPS) + beta
    z = z * jax.nn.sigmoid(z)
    return z.reshape(B, output_format[0], output_format[1])


if __name__ == "__main__":
    # Module config: input_format=(4,16) -> in_feat=64, output_format=(8,16) -> out_feat=128
    input_format = (4, 16)
    output_format = (8, 16)
    in_feat = input_format[0] * input_format[1]
    out_feat = output_format[0] * output_format[1]
    B = 4

    key = jax.random.PRNGKey(0)
    kx, kw, kb, kg, kbe = jax.random.split(key, 5)

    # Deterministic synthetic params (mimics nn.Linear's uniform fan-in init).
    bound = 1.0 / (in_feat ** 0.5)
    weight = jax.random.uniform(kw, (in_feat, out_feat), jnp.float32, -bound, bound)
    bias = jax.random.uniform(kb, (out_feat,), jnp.float32, -bound, bound)
    # BatchNorm1d affine params (perturbed from default init for a non-trivial test).
    gamma = jnp.ones((out_feat,), jnp.float32) + 0.1 * jax.random.normal(kg, (out_feat,))
    beta = 0.1 * jax.random.normal(kbe, (out_feat,))

    # Input: module accepts (B, in0, in1) and reshapes internally.
    x = jax.random.normal(kx, (B, input_format[0], input_format[1]), jnp.float32)

    out = upsample_linear_block(x, weight, bias, gamma, beta, output_format)
    out = jax.block_until_ready(out)
    assert out.shape == (B, output_format[0], output_format[1])

    # (a) Precision-matched reference: same bf16 matmul operands -> tight tolerance
    #     checks the BN/Swish math, bias cancellation, and tiling exactly.
    ref_match = _reference(x, weight, bias, gamma, beta, output_format,
                           matmul_dtype=jnp.bfloat16)
    assert jnp.allclose(out, ref_match, atol=2e-3, rtol=2e-3), \
        "mismatch vs precision-matched reference"

    # (b) Faithful float32 reference: loose tolerance bounds the bf16-operand rounding
    #     (relative ~2^-9 per operand, well inside 5e-2 after normalization + swish).
    ref_exact = _reference(x, weight, bias, gamma, beta, output_format,
                           matmul_dtype=jnp.float32)
    assert jnp.allclose(out, ref_exact, atol=5e-2, rtol=5e-2), \
        "mismatch vs float32 reference"

    print("KERNEL_OK")
</pallas_src>

<mosaic_0001>
module attributes {stable_mosaic.version = 11 : i64} {
  func.func @_upsample_linear_block_kernel(%arg0: i32, %arg1: i32, %arg2: memref<4x64xbf16, #tpu.memory_space<vmem>>, %arg3: memref<64x128xbf16, #tpu.memory_space<vmem>>, %arg4: memref<2x128xf32, #tpu.memory_space<vmem>>, %arg5: memref<4x128xf32, #tpu.memory_space<vmem>>, %arg6: memref<4x128xf32, #tpu.memory_space<vmem>>) attributes {dimension_semantics = [#tpu.dimension_semantics<parallel>, #tpu.dimension_semantics<arbitrary>], iteration_bounds = array<i64: 1, 1>, scalar_prefetch = 0 : i64, scratch_operands = 1 : i64, tpu.core_type = #tpu.core_type<tc>, window_params = [{transform_indices = @transform_0, window_bounds = array<i64: 4, 64>}, {transform_indices = @transform_1, window_bounds = array<i64: 64, 128>}, {transform_indices = @transform_2, window_bounds = array<i64: 2, 128>}, {transform_indices = @transform_3, window_bounds = array<i64: 4, 128>}]} {
    %c0_i32 = arith.constant 0 : i32
    %0 = arith.cmpi eq, %arg1, %c0_i32 : i32
    %1 = arith.extui %0 : i1 to i32
    %c0_i32_0 = arith.constant 0 : i32
    %2 = arith.cmpi ne, %1, %c0_i32_0 : i32
    scf.if %2 {
      %cst_10 = arith.constant 0.000000e+00 : f32
      %12 = vector.broadcast %cst_10 : f32 to vector<4x128xf32>
      %c0_11 = arith.constant 0 : index
      %c0_12 = arith.constant 0 : index
      %13 = vector.load %arg6[%c0_11, %c0_12] : memref<4x128xf32, #tpu.memory_space<vmem>>, vector<4x128xf32>
      tpu.vector_store %arg6[%c0_11, %c0_12], %12 {strides = array<i32>} : memref<4x128xf32, #tpu.memory_space<vmem>>, vector<4x128xf32>,
    } else {
    }
    %c0 = arith.constant 0 : index
    %c0_1 = arith.constant 0 : index
    %3 = vector.load %arg6[%c0, %c0_1] : memref<4x128xf32, #tpu.memory_space<vmem>>, vector<4x128xf32>
    %c0_2 = arith.constant 0 : index
    %c0_3 = arith.constant 0 : index
    %4 = vector.load %arg2[%c0_2, %c0_3] : memref<4x64xbf16, #tpu.memory_space<vmem>>, vector<4x64xbf16>
    %c0_4 = arith.constant 0 : index
    %c0_5 = arith.constant 0 : index
    %5 = vector.load %arg3[%c0_4, %c0_5] : memref<64x128xbf16, #tpu.memory_space<vmem>>, vector<64x128xbf16>
    %cst = arith.constant dense<0.000000e+00> : vector<4x128xf32>
    %6 = tpu.matmul %4, %5, %cst {dimension_numbers = #tpu.dot_dimension_numbers<[1], [0], [0], [1], [0, 0, 1, 1], [], []>} : vector<4x64xbf16>, vector<64x128xbf16>, vector<4x128xf32> -> vector<4x128xf32>
    %7 = arith.addf %3, %6 : vector<4x128xf32>
    %c0_6 = arith.constant 0 : index
    %c0_7 = arith.constant 0 : index
    %8 = vector.load %arg6[%c0_6, %c0_7] : memref<4x128xf32, #tpu.memory_space<vmem>>, vector<4x128xf32>
    tpu.vector_store %arg6[%c0_6, %c0_7], %7 {strides = array<i32>} : memref<4x128xf32, #tpu.memory_space<vmem>>, vector<4x128xf32>,
    %c0_i32_8 = arith.constant 0 : i32
    %9 = arith.cmpi eq, %arg1, %c0_i32_8 : i32
    %10 = arith.extui %9 : i1 to i32
    %c0_i32_9 = arith.constant 0 : i32
    %11 = arith.cmpi ne, %10, %c0_i32_9 : i32
    scf.if %11 {
      %c0_10 = arith.constant 0 : index
      %c0_11 = arith.constant 0 : index
      %12 = vector.load %arg6[%c0_10, %c0_11] : memref<4x128xf32, #tpu.memory_space<vmem>>, vector<4x128xf32>
      %cst_12 = arith.constant dense<0.000000e+00> : vector<128xf32>
      %13 = vector.multi_reduction <add>, %12, %cst_12 [0] : vector<4x128xf32> to vector<128xf32>
      %14 = vector.shape_cast %13 : vector<128xf32> to vector<1x128xf32>
      %cst_13 = arith.constant 4.000000e+00 : f32
      %15 = vector.broadcast %cst_13 : f32 to vector<1x128xf32>
      %16 = arith.divf %14, %15 : vector<1x128xf32>
      %17 = arith.mulf %12, %12 : vector<4x128xf32>
      %cst_14 = arith.constant dense<0.000000e+00> : vector<128xf32>
      %18 = vector.multi_reduction <add>, %17, %cst_14 [0] : vector<4x128xf32> to vector<128xf32>
      %19 = vector.shape_cast %18 : vector<128xf32> to vector<1x128xf32>
      %cst_15 = arith.constant 4.000000e+00 : f32
      %20 = vector.broadcast %cst_15 : f32 to vector<1x128xf32>
      %21 = arith.divf %19, %20 : vector<1x128xf32>
      %22 = arith.mulf %16, %16 : vector<1x128xf32>
      %23 = arith.subf %21, %22 : vector<1x128xf32>
      %cst_16 = arith.constant 0.000000e+00 : f32
      %24 = vector.broadcast %cst_16 : f32 to vector<1x128xf32>
      %25 = arith.maximumf %23, %24 : vector<1x128xf32>
      %cst_17 = arith.constant 9.99999974E-6 : f32
      %26 = vector.broadcast %cst_17 : f32 to vector<1x128xf32>
      %27 = arith.addf %25, %26 : vector<1x128xf32>
      %28 = math.rsqrt %27 : vector<1x128xf32>
      %c0_18 = arith.constant 0 : index
      %c0_19 = arith.constant 0 : index
      %29 = vector.load %arg4[%c0_18, %c0_19] : memref<2x128xf32, #tpu.memory_space<vmem>>, vector<2x128xf32>
      %30 = vector.extract_strided_slice %29 {offsets = [0, 0], sizes = [1, 128], strides = [1, 1]} : vector<2x128xf32> to vector<1x128xf32>
      %31 = vector.extract_strided_slice %29 {offsets = [1, 0], sizes = [1, 128], strides = [1, 1]} : vector<2x128xf32> to vector<1x128xf32>
      %32 = arith.mulf %30, %28 : vector<1x128xf32>
      %33 = arith.mulf %16, %32 : vector<1x128xf32>
      %34 = arith.subf %31, %33 : vector<1x128xf32>
      %35 = vector.broadcast %32 : vector<1x128xf32> to vector<4x128xf32>
      %36 = arith.mulf %12, %35 : vector<4x128xf32>
      %37 = vector.broadcast %34 : vector<1x128xf32> to vector<4x128xf32>
      %38 = arith.addf %36, %37 : vector<4x128xf32>
      %cst_20 = arith.constant 5.000000e-01 : f32
      %39 = vector.broadcast %cst_20 : f32 to vector<4x128xf32>
      %40 = arith.mulf %39, %38 : vector<4x128xf32>
      %cst_21 = arith.constant 5.000000e-01 : f32
      %41 = vector.broadcast %cst_21 : f32 to vector<4x128xf32>
      %42 = arith.mulf %41, %38 : vector<4x128xf32>
      %43 = math.tanh %42 : vector<4x128xf32>
      %cst_22 = arith.constant 1.000000e+00 : f32
      %44 = vector.broadcast %cst_22 : f32 to vector<4x128xf32>
      %45 = arith.addf %44, %43 : vector<4x128xf32>
      %46 = arith.mulf %40, %45 : vector<4x128xf32>
      %c0_23 = arith.constant 0 : index
      %c0_24 = arith.constant 0 : index
      %47 = vector.load %arg5[%c0_23, %c0_24] : memref<4x128xf32, #tpu.memory_space<vmem>>, vector<4x128xf32>
      tpu.vector_store %arg5[%c0_23, %c0_24], %46 {strides = array<i32>} : memref<4x128xf32, #tpu.memory_space<vmem>>, vector<4x128xf32>,
    } else {
    }
    return
  }
  func.func @transform_0(%arg0: i32, %arg1: i32) -> (i32, i32) {
    %c0_i32 = arith.constant 0 : i32
    %c0_i32_0 = arith.constant 0 : i32
    return %c0_i32, %arg1 : i32, i32
  }
  func.func @transform_1(%arg0: i32, %arg1: i32) -> (i32, i32) {
    %c0_i32 = arith.constant 0 : i32
    return %arg1, %arg0 : i32, i32
  }
  func.func @transform_2(%arg0: i32, %arg1: i32) -> (i32, i32) {
    %c0_i32 = arith.constant 0 : i32
    %c0_i32_0 = arith.constant 0 : i32
    return %c0_i32, %arg0 : i32, i32
  }
  func.func @transform_3(%arg0: i32, %arg1: i32) -> (i32, i32) {
    %c0_i32 = arith.constant 0 : i32
    %c0_i32_0 = arith.constant 0 : i32
    return %c0_i32, %arg0 : i32, i32
  }
}

</mosaic_0001>

<llo_original>
// kernel: tpu_custom_call.1
$region0: #{tpu_custom_call.1}
  #allocation0 [shape = 'u32[]', space=smem, size = 0x4, offset = 0x4, fixed_abs, tag = 'smem constant byte address 0x4 - core index']
  #allocation1 [shape = 'u32[144,128]{1,0:T(1,128)}', space=vmem, size = 0x12000, scoped, tag = 'internal scratch']
  #allocation2 [shape = 'f32[4,128]{1,0:T(4,128)}', space=vmem, size = 0x800, scoped, tag = 'scratch operand']
  %s0 = inlined_call_operand.hbm [shape: bf16[4,64], index: 0, kind: input, shape index: {}]
  %s1 = inlined_call_operand.hbm [shape: bf16[64,128], index: 1, kind: input, shape index: {}]
  %s2 = inlined_call_operand.vmem [shape: f32[2,128], index: 2, kind: input, shape index: {}]
  %s3 = inlined_call_operand.hbm [shape: f32[4,128], index: 3, kind: output, shape index: {}]
  %s4 = sld [smem:[#allocation0]]
  $region38: #{tpu_custom_call.1} parent=0
    _
  %s6 = ssub.s32 1, %s4
  %s7 = scalar_select 0, %s6, %s4
  $region1: #{tpu_custom_call.1} parent=0
    #allocation3 [shape = 'u8[1024]{0}', space=vmem, size = 0x400, scoped, tag = 'input window, operand 0, single buffered']
    #allocation4 [shape = 's32[1]{0}', space=sflag, size = 0x4, scoped, tag = 'scoped memory for tpu_custom_call.1']
    #allocation5 [shape = 's32[1]{0}', space=sflag, size = 0x4, scoped, tag = 'scoped memory for tpu_custom_call.1']
    #allocation6 [shape = 'u8[16384]{0}', space=vmem, size = 0x4000, scoped, tag = 'input window, operand 1, single buffered']
    #allocation7 [shape = 's32[1]{0}', space=sflag, size = 0x4, scoped, tag = 'scoped memory for tpu_custom_call.1']
    #allocation8 [shape = 'u8[2048]{0}', space=vmem, size = 0x800, scoped, tag = 'output window, operand 0, single buffered']
    %8 = vsyncpa [#allocation4], 0
    %9 = vsyncpa [#allocation7], 0
    %10 = vsyncpa [#allocation5], 0
    // Predicated region
    $region2: #{tpu_custom_call.1} parent=1 // pred_check
      _
    $region3: #{tpu_custom_call.1} parent=1 // pred_check_branch
      %12 = sbr.rel (0) target = $region5
    $region4: #{tpu_custom_call.1} parent=1 // pred_region
      %s14 = ssub.s32 32, 32
      %15 = vsyncadd [#allocation4], %s14
      %s17 = sshll.u32 [#allocation3], 4
      %s18 = int_to_ptr.vmem [resolvable:$true] %s17
      %20 = dma.hbm_to_vmem [thread:$0]  %s0, 32, %s18, [#allocation4]
    $region5: #{tpu_custom_call.1} parent=1 // pred_fallthru
      _
    // Predicated region
    $region6: #{tpu_custom_call.1} parent=1 // pred_check
      _
    $region7: #{tpu_custom_call.1} parent=1 // pred_check_branch
      %22 = sbr.rel (0) target = $region9
    $region8: #{tpu_custom_call.1} parent=1 // pred_region
      %s24 = ssub.s32 512, 512
      %25 = vsyncadd [#allocation7], %s24
      %s26 = sshll.u32 [#allocation6], 4
      %s27 = int_to_ptr.vmem [resolvable:$true] %s26
      %32 = dma.hbm_to_vmem [thread:$0]  %s1, 512, %s27, [#allocation7], 64, 64, 4
    $region9: #{tpu_custom_call.1} parent=1 // pred_fallthru
      _
    // Predicated region
    $region10: #{tpu_custom_call.1} parent=1 // pred_check
      _
    $region11: #{tpu_custom_call.1} parent=1 // pred_check_branch
      %34 = sbr.rel (0) target = $region13
    $region12: #{tpu_custom_call.1} parent=1 // pred_region
      _
    $region13: #{tpu_custom_call.1} parent=1 // pred_fallthru
      _
    // Predicated region
    $region14: #{tpu_custom_call.1} parent=1 // pred_check
      _
    $region15: #{tpu_custom_call.1} parent=1 // pred_check_branch
      %36 = sbr.rel (0) target = $region17
    $region16: #{tpu_custom_call.1} parent=1 // pred_region
      %37 = dma.done [#allocation4], 32
    $region17: #{tpu_custom_call.1} parent=1 // pred_fallthru
      _
    // Predicated region
    $region18: #{tpu_custom_call.1} parent=1 // pred_check
      _
    $region19: #{tpu_custom_call.1} parent=1 // pred_check_branch
      %39 = sbr.rel (0) target = $region21
    $region20: #{tpu_custom_call.1} parent=1 // pred_region
      %40 = dma.done [#allocation7], 512
    $region21: #{tpu_custom_call.1} parent=1 // pred_fallthru
      _
    %p42 = scmp.eq.s32.totalorder 0, 0
    // Predicated region
    $region22: #{tpu_custom_call.1} parent=1 // pred_check
      %p43 = pneg %p42
    $region23: #{tpu_custom_call.1} parent=1 // pred_check_branch
      %45 = sbr.rel (%p43) target = $region25
    $region24: #{tpu_custom_call.1} parent=1 // pred_region
      %46 = vst [vmem:[#allocation2] sm:$0xf] 0.0
    $region25: #{tpu_custom_call.1} parent=1 // pred_fallthru
      _
    %v47 = vld [vmem:[#allocation2] sm:$0xf]
    %v48 = vld [vmem:[#allocation3] sm:$0x3]
    %v49 = vld [vmem:[#allocation6] sm:$0xf]
    %v50 = vld [vmem:[#allocation6 + $0x4] sm:$0xf]
    %v51 = vld [vmem:[#allocation6 + $0x8] sm:$0xf]
    %v52 = vld [vmem:[#allocation6 + $0xc] sm:$0xf]
    %v53 = vld [vmem:[#allocation6 + $0x10] sm:$0xf]
    %v54 = vld [vmem:[#allocation6 + $0x14] sm:$0xf]
    %v55 = vld [vmem:[#allocation6 + $0x18] sm:$0xf]
    %v56 = vld [vmem:[#allocation6 + $0x1c] sm:$0xf]
    %v65 = vunpack.c.l.b16 %v49
    %v66 = vunpack.c.l.b16 %v50
    %v67 = vunpack.c.l.b16 %v51
    %v68 = vunpack.c.l.b16 %v52
    %v69 = vunpack.c.l.b16 %v53
    %v70 = vunpack.c.l.b16 %v54
    %v71 = vunpack.c.l.b16 %v55
    %v72 = vunpack.c.l.b16 %v56
    %v73 = vpack.c.b16 %v66, %v65
    %v74 = vpack.c.b16 %v68, %v67
    %v75 = vpack.c.b16 %v70, %v69
    %v76 = vpack.c.b16 %v72, %v71
    %vm81 = vcmask 523264
    %v83 = vsel %vm81, %v48, 0
    %85 = vmatprep.subr.bf16.mxu0 0
    %86 = vmatpush1.bf16.msra.mxu0 0
    %87 = vmatprep.subr.bf16.mxu0 0
    %88 = vmatpush1.bf16.msra.mxu0 0
    %89 = vmatprep.subr.bf16.mxu0 0
    %90 = vmatpush1.bf16.msra.mxu0 0
    %91 = vmatprep.subr.bf16.mxu0 0
    %92 = vmatpush1.bf16.msra.mxu0 0
    %93 = vmatprep.subr.bf16.mxu0 0
    %94 = vmatpush1.bf16.msra.mxu0 %v76
    %95 = vmatprep.subr.bf16.mxu0 0
    %96 = vmatpush1.bf16.msra.mxu0 %v75
    %97 = vmatprep.subr.bf16.mxu0 0
    %98 = vmatpush1.bf16.msra.mxu0 %v74
    %99 = vmatprep.subr.bf16.mxu0 0
    %100 = vmatpush1.bf16.msra.mxu0 %v73
    %101 = vmatprep.subr.bf16.mxu0 0
    %102 = vmatpush2.bf16.msra.mxu0 0
    %103 = vmatprep.subr.bf16.mxu0 0
    %104 = vmatpush2.bf16.msra.mxu0 0
    %105 = vmatprep.subr.bf16.mxu0 0
    %106 = vmatpush2.bf16.msra.mxu0 0
    %107 = vmatprep.subr.bf16.mxu0 0
    %108 = vmatpush2.bf16.msra.mxu0 0
    %109 = vmatprep.subr.bf16.mxu0 0
    %110 = vmatpush2.bf16.msra.mxu0 0
    %111 = vmatprep.subr.bf16.mxu0 0
    %112 = vmatpush2.bf16.msra.mxu0 0
    %113 = vmatprep.subr.bf16.mxu0 0
    %114 = vmatpush2.bf16.msra.mxu0 0
    %115 = vmatprep.subr.bf16.mxu0 0
    %116 = vmatpush2.bf16.msra.mxu0 0
    %117 = vmatprep.mubr.bf16.mxu0 0
    %118 = vmatmul.mubr.bf16.gmra.mxu0 %v83
    %v119 = vpop.f32.mrf.mxu0
    %v120 = vadd.f32 0.0, %v119
    %v121 = vpop.f32.mrf.mxu0
    %v122 = vpop.f32.mrf.mxu0
    %v123 = vpop.f32.mrf.mxu0
    %124 = vdwg.mxu0
    %v125 = vadd.f32 %v47, %v120
    %126 = vst [vmem:[#allocation2] sm:$0xf] %v125
    // Predicated region
    $region26: #{tpu_custom_call.1} parent=1 // pred_check
      %p127 = pneg %p42
    $region27: #{tpu_custom_call.1} parent=1 // pred_check_branch
      %129 = sbr.rel (%p127) target = $region29
    $region28: #{tpu_custom_call.1} parent=1 // pred_region
      %v130 = vld [vmem:[#allocation2] sm:$0xf]
      %vm131 = vcmask 1043456
      %v132 = vsel %vm131, %v130, 0.0
      %v133 = vrot.slane %v132, 4
      %v134 = vadd.f32 %v132, %v133
      %v135 = vrot.slane %v134, 2
      %v136 = vadd.f32 %v134, %v135
      %v137 = vrot.slane %v136, 1
      %v138 = vadd.f32 %v136, %v137
      %v139 = vrcp.pop 4.0
      %v140 = vmul.f32 %v138, %v139
      %v141 = vmul.f32 %v130, %v130
      %v142 = vsel %vm131, %v141, 0.0
      %v143 = vrot.slane %v142, 4
      %v144 = vadd.f32 %v142, %v143
      %v145 = vrot.slane %v144, 2
      %v146 = vadd.f32 %v144, %v145
      %v147 = vrot.slane %v146, 1
      %v148 = vadd.f32 %v146, %v147
      %v149 = vmul.f32 %v148, %v139
      %v150 = vmul.f32 %v140, %v140
      %v151 = vsub.f32 %v149, %v150
      %v152 = vmax.f32 %v151, 0.0
      %v153 = vadd.f32 %v152, 1e-05
      %v154 = vrsqrt.pop %v153
      %v155 = vld [vmem:[%s2] sm:$0x3]
      %v156 = vmul.f32 %v155, %v154
      %v157 = vmul.f32 %v140, %v156
      %v159 = vrot.slane %v157, 7
      %v161 = vsub.f32 %v155, %v159
      %v162 = vlaneseq
      %v163 = vshrl.u32 %v162, 7
      %v164 = vsub.s32 0, %v163
      %v165 = vrot.slane %v156, %v164
      %v166 = vmul.f32 %v130, %v165
      %v167 = vlaneseq
      %v168 = vshrl.u32 %v167, 7
      %v169 = vsub.s32 1, %v168
      %v170 = vrot.slane %v161, %v169
      %v171 = vadd.f32 %v166, %v170
      %v172 = vmul.f32 %v171, 0.5
      %v173 = vtanh.pop %v172
      %v174 = vadd.f32 %v173, 1.0
      %v175 = vmul.f32 %v172, %v174
      %176 = vst [vmem:[#allocation8] sm:$0xf] %v175
    $region29: #{tpu_custom_call.1} parent=1 // pred_fallthru
      _
    // Predicated region
    $region30: #{tpu_custom_call.1} parent=1 // pred_check
      _
    $region31: #{tpu_custom_call.1} parent=1 // pred_check_branch
      %178 = sbr.rel (0) target = $region33
    $region32: #{tpu_custom_call.1} parent=1 // pred_region
      %s180 = ssub.s32 64, 64
      %181 = vsyncadd [#allocation5], %s180
      %s183 = sshll.u32 [#allocation8], 4
      %s184 = int_to_ptr.vmem [resolvable:$true] %s183
      %186 = dma.vmem_to_hbm [thread:$0]  %s184, 64, %s3, [#allocation5]
    $region33: #{tpu_custom_call.1} parent=1 // pred_fallthru
      _
    // Predicated region
    $region34: #{tpu_custom_call.1} parent=1 // pred_check
      _
    $region35: #{tpu_custom_call.1} parent=1 // pred_check_branch
      %188 = sbr.rel (0) target = $region37
    $region36: #{tpu_custom_call.1} parent=1 // pred_region
      %189 = dma.done [#allocation5], 64
    $region37: #{tpu_custom_call.1} parent=1 // pred_fallthru
      _
    %190 = vsyncpa [#allocation4], 1
    %191 = vsyncpa [#allocation7], 1
    %192 = vsyncpa [#allocation5], 1

</llo_original>
